<compile_context>
chip_gen: v5e
topology: v5e:2x2
jax: 0.10.0
libtpu: 0.0.40
codegen_flags: <defaults>
</compile_context>

<pallas_src>
import functools

import jax
import jax.numpy as jnp
from jax.experimental import pallas as pl
from jax.experimental.pallas import tpu as pltpu


def _round_up(n, m):
    return ((n + m - 1) // m) * m


@functools.lru_cache(maxsize=None)
def _default_bf16_epilogue():
    """bf16 bias/ReLU epilogue on bf16-VALU chips (v6e/v7x); f32 on v5e/older."""
    try:
        kind = jax.devices()[0].device_kind.lower()
    except Exception:
        return True
    return not any(tag in kind for tag in ("v2", "v3", "v4", "v5"))


def _residual_advantage_kernel(x_ref,
                               w1_ref, b1_ref,
                               w2_ref, b2_ref,
                               w3_ref, b3_ref,
                               wq_ref, bq_ref,
                               o_ref,
                               *, chunk, n_chunks, bf16_epilogue):
    # Hoist the (tiny) bias loads/casts out of the chunk loop.  Weights are
    # indexed per-use so the MXU streams them from VMEM (no huge live values).
    if bf16_epilogue:
        b1 = b1_ref[...].astype(jnp.bfloat16)
        b2 = b2_ref[...].astype(jnp.bfloat16)
        b3 = b3_ref[...].astype(jnp.bfloat16)
    else:
        b1 = b1_ref[...]
        b2 = b2_ref[...]
        b3 = b3_ref[...]
    bq = bq_ref[...]

    def bias_relu(h_f32, b):
        if bf16_epilogue:
            # v6e/v7x: bf16-native VALU -> half the elementwise vreg traffic;
            # result feeds the next MXU matmul directly.
            return jnp.maximum(h_f32.astype(jnp.bfloat16) + b, 0)
        # v5e: no bf16 VALU -> keep the epilogue in f32, cast once for the MXU.
        return jnp.maximum(h_f32 + b, 0.0).astype(jnp.bfloat16)

    def compute(row):
        xb = x_ref[row:row + chunk, :]
        h = bias_relu(jnp.dot(xb, w1_ref[...],
                              preferred_element_type=jnp.float32), b1)
        h = bias_relu(jnp.dot(h, w2_ref[...],
                              preferred_element_type=jnp.float32), b2)
        h = bias_relu(jnp.dot(h, w3_ref[...],
                              preferred_element_type=jnp.float32), b3)
        q = jnp.dot(h, wq_ref[...], preferred_element_type=jnp.float32)
        o_ref[row:row + chunk, :] = (q + bq).astype(o_ref.dtype)

    # Fully unrolled sub-blocking over the M (row) dimension: keeps the live
    # f32 accumulator to <= chunk x 256 x 4 B and lets the scheduler co-issue
    # chunk j+1's matmuls with chunk j's bias/ReLU/cast.
    for c in range(n_chunks):
        compute(c * chunk)


def _choose_tm(B, tm_max):
    tm_max = max(16, tm_max)
    # Batch-adaptive, multiple of 16 (bf16 sublane packing; also /8 for f32 out).
    b_al = _round_up(B, 16)
    tm = min(tm_max, b_al)
    # If a single tile would cover the whole batch and there is room to split,
    # halve it so the grid has >=2 steps (v7x megacore sharding via "parallel").
    if b_al <= tm and b_al >= 32:
        tm = _round_up((b_al + 1) // 2, 16)
    return tm


@functools.partial(jax.jit,
                   static_argnames=("num_actions", "tm_max", "bf16_epilogue"))
def _forward_impl(x, w1, b1, w2, b2, w3, b3, wq, bq,
                  *, num_actions, tm_max, bf16_epilogue):
    B, F = x.shape
    F_pad, H = w1.shape
    A_pad = wq.shape[1]

    tm = _choose_tm(B, tm_max)
    B_pad = _round_up(B, tm)
    chunk = 64 if tm % 64 == 0 else tm
    n_chunks = tm // chunk
    grid = (B_pad // tm,)

    # Only per-call prep: zero-pad + bf16-cast the activations.
    x_p = jnp.zeros((B_pad, F_pad), jnp.bfloat16).at[:B, :F].set(
        x.astype(jnp.bfloat16))

    # VMEM budget: resident weights/biases + double-buffered x/out tiles
    # (+ headroom for intermediates) -- a few MiB, not the 32/64 MiB default.
    weight_bytes = 2 * (F_pad * H + 2 * H * H + H * A_pad)      # bf16
    bias_bytes = 4 * (3 * H + A_pad)                            # f32
    io_bytes = tm * (2 * F_pad + 4 * A_pad)                     # bf16 in, f32 out
    vmem_limit = int(2 * (weight_bytes + bias_bytes + io_bytes)) + (4 << 20)

    x_spec = pl.BlockSpec((tm, F_pad), lambda i: (i, 0))
    out_spec = pl.BlockSpec((tm, A_pad), lambda i: (i, 0))
    # Constant index_maps: single block, stays resident in VMEM across steps.
    resident = lambda shape: pl.BlockSpec(shape, lambda i: (0, 0))

    kernel = functools.partial(_residual_advantage_kernel,
                               chunk=chunk, n_chunks=n_chunks,
                               bf16_epilogue=bf16_epilogue)

    out_padded = pl.pallas_call(
        kernel,
        out_shape=jax.ShapeDtypeStruct((B_pad, A_pad), jnp.float32),
        grid=grid,
        in_specs=[
            x_spec,
            resident(w1.shape), resident(b1.shape),
            resident(w2.shape), resident(b2.shape),
            resident(w3.shape), resident(b3.shape),
            resident(wq.shape), resident(bq.shape),
        ],
        out_specs=out_spec,
        compiler_params=pltpu.CompilerParams(
            dimension_semantics=("parallel",),
            vmem_limit_bytes=vmem_limit,
        ),
    )(x_p, w1, b1, w2, b2, w3, b3, wq, bq)

    return out_padded[:B, :num_actions]


def prepare_params(params):
    """One-time prep (call at init, NOT per forward): zero-pad feature/action
    dims to 128 lanes and cast matmul operands to bf16; biases stay f32."""
    F, H = params["w1"].shape
    A = params["wq"].shape[1]
    F_pad = _round_up(F, 128)
    A_pad = _round_up(A, 128)

    w1 = jnp.zeros((F_pad, H), jnp.bfloat16).at[:F, :].set(
        params["w1"].astype(jnp.bfloat16))
    w2 = params["w2"].astype(jnp.bfloat16)
    w3 = params["w3"].astype(jnp.bfloat16)
    wq = jnp.zeros((H, A_pad), jnp.bfloat16).at[:, :A].set(
        params["wq"].astype(jnp.bfloat16))
    b1 = params["b1"].astype(jnp.float32)
    b2 = params["b2"].astype(jnp.float32)
    b3 = params["b3"].astype(jnp.float32)
    bq = jnp.zeros((1, A_pad), jnp.float32).at[:, :A].set(
        params["bq"].astype(jnp.float32))
    return {"w1": w1, "b1": b1, "w2": w2, "b2": b2,
            "w3": w3, "b3": b3, "wq": wq, "bq": bq,
            "num_actions": A}


def residual_advantage_forward(x, prepped, *, tm_max=512, bf16_epilogue=None):
    """x: (B, num_features) f32.  prepped: output of prepare_params()."""
    if bf16_epilogue is None:
        bf16_epilogue = _default_bf16_epilogue()
    return _forward_impl(
        x,
        prepped["w1"], prepped["b1"],
        prepped["w2"], prepped["b2"],
        prepped["w3"], prepped["b3"],
        prepped["wq"], prepped["bq"],
        num_actions=prepped["num_actions"],
        tm_max=tm_max,
        bf16_epilogue=bool(bf16_epilogue))


def make_params(key, num_features, num_actions, hidden=256):
    """Deterministic synthetic init. q_out is zero-initialized, matching the module."""
    ks = jax.random.split(key, 6)

    def linear(kw, kb, fan_in, fan_out):
        # PyTorch-style uniform(-1/sqrt(fan_in), 1/sqrt(fan_in)); stored (in, out).
        bound = 1.0 / jnp.sqrt(jnp.float32(fan_in))
        w = jax.random.uniform(kw, (fan_in, fan_out), jnp.float32, -bound, bound)
        b = jax.random.uniform(kb, (1, fan_out), jnp.float32, -bound, bound)
        return w, b

    w1, b1 = linear(ks[0], ks[1], num_features, hidden)
    w2, b2 = linear(ks[2], ks[3], hidden, hidden)
    w3, b3 = linear(ks[4], ks[5], hidden, hidden)
    # q_out.weight and q_out.bias are explicitly zeroed in __init__.
    wq = jnp.zeros((hidden, num_actions), jnp.float32)
    bq = jnp.zeros((1, num_actions), jnp.float32)
    return {"w1": w1, "b1": b1, "w2": w2, "b2": b2,
            "w3": w3, "b3": b3, "wq": wq, "bq": bq}


def reference_forward(x, p):
    h = jnp.maximum(x @ p["w1"] + p["b1"], 0.0)
    h = jnp.maximum(h @ p["w2"] + p["b2"], 0.0)
    h = jnp.maximum(h @ p["w3"] + p["b3"], 0.0)
    return h @ p["wq"] + p["bq"]


if __name__ == "__main__":
    key = jax.random.PRNGKey(0)
    k_x, k_p, k_wq, k_bq, k_x2 = jax.random.split(key, 5)

    batch = 8
    num_features = 32
    num_actions = 8
    hidden = 256  # fixed by the module

    x = jax.random.normal(k_x, (batch, num_features), jnp.float32)
    params = make_params(k_p, num_features, num_actions, hidden)
    prepped = prepare_params(params)

    # 1) Faithful module forward: zero-initialized q_out head -> exact zeros.
    q = jax.block_until_ready(residual_advantage_forward(x, prepped))
    assert q.shape == (batch, num_actions)
    assert jnp.allclose(q, reference_forward(x, params), atol=1e-5, rtol=1e-5)

    # 2) Kernel-numerics check with a non-trivial head (zero head is vacuous).
    #    Tolerance accounts for bf16 MXU operands / bf16 epilogue.
    bound = 1.0 / jnp.sqrt(jnp.float32(hidden))
    params_nz = dict(params)
    params_nz["wq"] = jax.random.uniform(k_wq, (hidden, num_actions),
                                         jnp.float32, -bound, bound)
    params_nz["bq"] = jax.random.uniform(k_bq, (1, num_actions),
                                         jnp.float32, -bound, bound)
    prepped_nz = prepare_params(params_nz)
    q_nz = jax.block_until_ready(residual_advantage_forward(x, prepped_nz))
    q_ref = reference_forward(x, params_nz)
    assert q_nz.shape == (batch, num_actions)
    assert jnp.allclose(q_nz, q_ref, atol=5e-2, rtol=5e-2)

    # 3) Larger batch: exercises the multi-step grid and the in-kernel
    #    64-row chunk unrolling (tm=512 -> 8 chunks, 2 grid steps).
    x_big = jax.random.normal(k_x2, (640, num_features), jnp.float32)
    q_big = jax.block_until_ready(residual_advantage_forward(x_big, prepped_nz))
    q_big_ref = reference_forward(x_big, params_nz)
    assert q_big.shape == (640, num_actions)
    assert jnp.allclose(q_big, q_big_ref, atol=1e-1, rtol=1e-1)

    print("KERNEL_OK")
</pallas_src>

<mosaic_0001>
module attributes {stable_mosaic.version = 11 : i64} {
  func.func @_residual_advantage_kernel(%arg0: i32, %arg1: memref<16x128xbf16, #tpu.memory_space<vmem>>, %arg2: memref<128x256xbf16, #tpu.memory_space<vmem>>, %arg3: memref<1x256xf32, #tpu.memory_space<vmem>>, %arg4: memref<256x256xbf16, #tpu.memory_space<vmem>>, %arg5: memref<1x256xf32, #tpu.memory_space<vmem>>, %arg6: memref<256x256xbf16, #tpu.memory_space<vmem>>, %arg7: memref<1x256xf32, #tpu.memory_space<vmem>>, %arg8: memref<256x128xbf16, #tpu.memory_space<vmem>>, %arg9: memref<1x128xf32, #tpu.memory_space<vmem>>, %arg10: memref<16x128xf32, #tpu.memory_space<vmem>>) attributes {dimension_semantics = [#tpu.dimension_semantics<parallel>], iteration_bounds = array<i64: 1>, scalar_prefetch = 0 : i64, scratch_operands = 0 : i64, tpu.core_type = #tpu.core_type<tc>, window_params = [{transform_indices = @transform_0, window_bounds = array<i64: 16, 128>}, {pipeline_mode = #tpu.pipeline_mode<synchronous>, transform_indices = @transform_1, window_bounds = array<i64: 128, 256>}, {pipeline_mode = #tpu.pipeline_mode<synchronous>, transform_indices = @transform_2, window_bounds = array<i64: 1, 256>}, {pipeline_mode = #tpu.pipeline_mode<synchronous>, transform_indices = @transform_3, window_bounds = array<i64: 256, 256>}, {pipeline_mode = #tpu.pipeline_mode<synchronous>, transform_indices = @transform_4, window_bounds = array<i64: 1, 256>}, {pipeline_mode = #tpu.pipeline_mode<synchronous>, transform_indices = @transform_5, window_bounds = array<i64: 256, 256>}, {pipeline_mode = #tpu.pipeline_mode<synchronous>, transform_indices = @transform_6, window_bounds = array<i64: 1, 256>}, {pipeline_mode = #tpu.pipeline_mode<synchronous>, transform_indices = @transform_7, window_bounds = array<i64: 256, 128>}, {pipeline_mode = #tpu.pipeline_mode<synchronous>, transform_indices = @transform_8, window_bounds = array<i64: 1, 128>}, {transform_indices = @transform_9, window_bounds = array<i64: 16, 128>}]} {
    %c0 = arith.constant 0 : index
    %c0_0 = arith.constant 0 : index
    %0 = vector.load %arg3[%c0, %c0_0] : memref<1x256xf32, #tpu.memory_space<vmem>>, vector<1x256xf32>
    %1 = arith.truncf %0 : vector<1x256xf32> to vector<1x256xbf16>
    %c0_1 = arith.constant 0 : index
    %c0_2 = arith.constant 0 : index
    %2 = vector.load %arg5[%c0_1, %c0_2] : memref<1x256xf32, #tpu.memory_space<vmem>>, vector<1x256xf32>
    %3 = arith.truncf %2 : vector<1x256xf32> to vector<1x256xbf16>
    %c0_3 = arith.constant 0 : index
    %c0_4 = arith.constant 0 : index
    %4 = vector.load %arg7[%c0_3, %c0_4] : memref<1x256xf32, #tpu.memory_space<vmem>>, vector<1x256xf32>
    %5 = arith.truncf %4 : vector<1x256xf32> to vector<1x256xbf16>
    %c0_5 = arith.constant 0 : index
    %c0_6 = arith.constant 0 : index
    %6 = vector.load %arg9[%c0_5, %c0_6] : memref<1x128xf32, #tpu.memory_space<vmem>>, vector<1x128xf32>
    %c0_7 = arith.constant 0 : index
    %c0_8 = arith.constant 0 : index
    %7 = vector.load %arg1[%c0_7, %c0_8] : memref<16x128xbf16, #tpu.memory_space<vmem>>, vector<16x128xbf16>
    %c0_9 = arith.constant 0 : index
    %c0_10 = arith.constant 0 : index
    %8 = vector.load %arg2[%c0_9, %c0_10] : memref<128x256xbf16, #tpu.memory_space<vmem>>, vector<128x256xbf16>
    %cst = arith.constant dense<0.000000e+00> : vector<16x256xf32>
    %9 = tpu.matmul %7, %8, %cst {dimension_numbers = #tpu.dot_dimension_numbers<[1], [0], [0], [1], [0, 0, 1, 1], [], []>} : vector<16x128xbf16>, vector<128x256xbf16>, vector<16x256xf32> -> vector<16x256xf32>
    %10 = arith.truncf %9 : vector<16x256xf32> to vector<16x256xbf16>
    %11 = vector.broadcast %1 : vector<1x256xbf16> to vector<16x256xbf16>
    %12 = arith.addf %10, %11 : vector<16x256xbf16>
    %cst_11 = arith.constant 0.000000e+00 : bf16
    %13 = vector.broadcast %cst_11 : bf16 to vector<16x256xbf16>
    %14 = arith.maximumf %12, %13 : vector<16x256xbf16>
    %c0_12 = arith.constant 0 : index
    %c0_13 = arith.constant 0 : index
    %15 = vector.load %arg4[%c0_12, %c0_13] : memref<256x256xbf16, #tpu.memory_space<vmem>>, vector<256x256xbf16>
    %cst_14 = arith.constant dense<0.000000e+00> : vector<16x256xf32>
    %16 = tpu.matmul %14, %15, %cst_14 {dimension_numbers = #tpu.dot_dimension_numbers<[1], [0], [0], [1], [0, 0, 1, 1], [], []>} : vector<16x256xbf16>, vector<256x256xbf16>, vector<16x256xf32> -> vector<16x256xf32>
    %17 = arith.truncf %16 : vector<16x256xf32> to vector<16x256xbf16>
    %18 = vector.broadcast %3 : vector<1x256xbf16> to vector<16x256xbf16>
    %19 = arith.addf %17, %18 : vector<16x256xbf16>
    %cst_15 = arith.constant 0.000000e+00 : bf16
    %20 = vector.broadcast %cst_15 : bf16 to vector<16x256xbf16>
    %21 = arith.maximumf %19, %20 : vector<16x256xbf16>
    %c0_16 = arith.constant 0 : index
    %c0_17 = arith.constant 0 : index
    %22 = vector.load %arg6[%c0_16, %c0_17] : memref<256x256xbf16, #tpu.memory_space<vmem>>, vector<256x256xbf16>
    %cst_18 = arith.constant dense<0.000000e+00> : vector<16x256xf32>
    %23 = tpu.matmul %21, %22, %cst_18 {dimension_numbers = #tpu.dot_dimension_numbers<[1], [0], [0], [1], [0, 0, 1, 1], [], []>} : vector<16x256xbf16>, vector<256x256xbf16>, vector<16x256xf32> -> vector<16x256xf32>
    %24 = arith.truncf %23 : vector<16x256xf32> to vector<16x256xbf16>
    %25 = vector.broadcast %5 : vector<1x256xbf16> to vector<16x256xbf16>
    %26 = arith.addf %24, %25 : vector<16x256xbf16>
    %cst_19 = arith.constant 0.000000e+00 : bf16
    %27 = vector.broadcast %cst_19 : bf16 to vector<16x256xbf16>
    %28 = arith.maximumf %26, %27 : vector<16x256xbf16>
    %c0_20 = arith.constant 0 : index
    %c0_21 = arith.constant 0 : index
    %29 = vector.load %arg8[%c0_20, %c0_21] : memref<256x128xbf16, #tpu.memory_space<vmem>>, vector<256x128xbf16>
    %cst_22 = arith.constant dense<0.000000e+00> : vector<16x128xf32>
    %30 = tpu.matmul %28, %29, %cst_22 {dimension_numbers = #tpu.dot_dimension_numbers<[1], [0], [0], [1], [0, 0, 1, 1], [], []>} : vector<16x256xbf16>, vector<256x128xbf16>, vector<16x128xf32> -> vector<16x128xf32>
    %31 = vector.broadcast %6 : vector<1x128xf32> to vector<16x128xf32>
    %32 = arith.addf %30, %31 : vector<16x128xf32>
    %c0_23 = arith.constant 0 : index
    %c0_24 = arith.constant 0 : index
    %33 = vector.load %arg10[%c0_23, %c0_24] : memref<16x128xf32, #tpu.memory_space<vmem>>, vector<16x128xf32>
    tpu.vector_store %arg10[%c0_23, %c0_24], %32 {strides = array<i32>} : memref<16x128xf32, #tpu.memory_space<vmem>>, vector<16x128xf32>,
    return
  }
  func.func @transform_0(%arg0: i32) -> (i32, i32) {
    %c0_i32 = arith.constant 0 : i32
    %c0_i32_0 = arith.constant 0 : i32
    return %arg0, %c0_i32 : i32, i32
  }
  func.func @transform_1(%arg0: i32) -> (i32, i32) {
    %c0_i32 = arith.constant 0 : i32
    %c0_i32_0 = arith.constant 0 : i32
    %c0_i32_1 = arith.constant 0 : i32
    return %c0_i32, %c0_i32_0 : i32, i32
  }
  func.func @transform_2(%arg0: i32) -> (i32, i32) {
    %c0_i32 = arith.constant 0 : i32
    %c0_i32_0 = arith.constant 0 : i32
    %c0_i32_1 = arith.constant 0 : i32
    return %c0_i32, %c0_i32_0 : i32, i32
  }
  func.func @transform_3(%arg0: i32) -> (i32, i32) {
    %c0_i32 = arith.constant 0 : i32
    %c0_i32_0 = arith.constant 0 : i32
    %c0_i32_1 = arith.constant 0 : i32
    return %c0_i32, %c0_i32_0 : i32, i32
  }
  func.func @transform_4(%arg0: i32) -> (i32, i32) {
    %c0_i32 = arith.constant 0 : i32
    %c0_i32_0 = arith.constant 0 : i32
    %c0_i32_1 = arith.constant 0 : i32
    return %c0_i32, %c0_i32_0 : i32, i32
  }
  func.func @transform_5(%arg0: i32) -> (i32, i32) {
    %c0_i32 = arith.constant 0 : i32
    %c0_i32_0 = arith.constant 0 : i32
    %c0_i32_1 = arith.constant 0 : i32
    return %c0_i32, %c0_i32_0 : i32, i32
  }
  func.func @transform_6(%arg0: i32) -> (i32, i32) {
    %c0_i32 = arith.constant 0 : i32
    %c0_i32_0 = arith.constant 0 : i32
    %c0_i32_1 = arith.constant 0 : i32
    return %c0_i32, %c0_i32_0 : i32, i32
  }
  func.func @transform_7(%arg0: i32) -> (i32, i32) {
    %c0_i32 = arith.constant 0 : i32
    %c0_i32_0 = arith.constant 0 : i32
    %c0_i32_1 = arith.constant 0 : i32
    return %c0_i32, %c0_i32_0 : i32, i32
  }
  func.func @transform_8(%arg0: i32) -> (i32, i32) {
    %c0_i32 = arith.constant 0 : i32
    %c0_i32_0 = arith.constant 0 : i32
    %c0_i32_1 = arith.constant 0 : i32
    return %c0_i32, %c0_i32_0 : i32, i32
  }
  func.func @transform_9(%arg0: i32) -> (i32, i32) {
    %c0_i32 = arith.constant 0 : i32
    %c0_i32_0 = arith.constant 0 : i32
    return %arg0, %c0_i32 : i32, i32
  }
}

</mosaic_0001>

<llo_original>
// kernel: _forward_impl.1
$region0: #{_forward_impl.1}
  #allocation0 [shape = 'u32[]', space=smem, size = 0x4, offset = 0x4, fixed_abs, tag = 'smem constant byte address 0x4 - core index']
  #allocation1 [shape = 'u32[72,128]{1,0:T(1,128)}', space=vmem, size = 0x9000, scoped, tag = 'internal scratch']
  %s0 = inlined_call_operand.vmem [shape: bf16[16,128], index: 0, kind: input, shape index: {}]
  %s1 = inlined_call_operand.hbm [shape: bf16[128,256], index: 1, kind: input, shape index: {}]
  %s2 = inlined_call_operand.vmem [shape: f32[1,256], index: 2, kind: input, shape index: {}]
  %s3 = inlined_call_operand.hbm [shape: bf16[256,256], index: 3, kind: input, shape index: {}]
  %s4 = inlined_call_operand.vmem [shape: f32[1,256], index: 4, kind: input, shape index: {}]
  %s5 = inlined_call_operand.hbm [shape: bf16[256,256], index: 5, kind: input, shape index: {}]
  %s6 = inlined_call_operand.vmem [shape: f32[1,256], index: 6, kind: input, shape index: {}]
  %s7 = inlined_call_operand.hbm [shape: bf16[256,128], index: 7, kind: input, shape index: {}]
  %s8 = inlined_call_operand.vmem [shape: f32[1,128], index: 8, kind: input, shape index: {}]
  %s9 = inlined_call_operand.vmem [shape: f32[16,128], index: 9, kind: output, shape index: {}]
  %s10 = sld [smem:[#allocation0]]
  $region62: #{_forward_impl.1} parent=0
    _
  %s12 = ssub.s32 1, %s10
  %s13 = scalar_select 0, %s12, %s10
  $region1: #{_forward_impl.1} parent=0
    #allocation2 [shape = 'u8[65536]{0}', space=vmem, size = 0x10000, scoped, tag = 'input window, operand 1, single buffered']
    #allocation3 [shape = 's32[1]{0}', space=sflag, size = 0x4, scoped, tag = 'scoped memory for _forward_impl.1']
    #allocation4 [shape = 'u8[131072]{0}', space=vmem, size = 0x20000, scoped, tag = 'input window, operand 3, single buffered']
    #allocation5 [shape = 's32[1]{0}', space=sflag, size = 0x4, scoped, tag = 'scoped memory for _forward_impl.1']
    #allocation6 [shape = 'u8[131072]{0}', space=vmem, size = 0x20000, scoped, tag = 'input window, operand 5, single buffered']
    #allocation7 [shape = 'u8[65536]{0}', space=vmem, size = 0x10000, scoped, tag = 'input window, operand 7, single buffered']
    #allocation8 [shape = 's32[1]{0}', space=sflag, size = 0x4, scoped, tag = 'scoped memory for _forward_impl.1']
    %14 = vsyncpa [#allocation3], 0
    %15 = vsyncpa [#allocation5], 0
    %16 = vsyncpa [#allocation8], 0
    // Predicated region
    $region2: #{_forward_impl.1} parent=1 // pred_check
      _
    $region3: #{_forward_impl.1} parent=1 // pred_check_branch
      %18 = sbr.rel (0) target = $region5
    $region4: #{_forward_impl.1} parent=1 // pred_region
      _
    $region5: #{_forward_impl.1} parent=1 // pred_fallthru
      _
    // Predicated region
    $region6: #{_forward_impl.1} parent=1 // pred_check
      _
    $region7: #{_forward_impl.1} parent=1 // pred_check_branch
      %20 = sbr.rel (0) target = $region9
    $region8: #{_forward_impl.1} parent=1 // pred_region
      %22 = vsyncadd [#allocation3], 0
      %s23 = sshll.u32 %s1, 4
      %s24 = int_to_ptr.hbm [resolvable:$true] %s23
      %s25 = sshll.u32 [#allocation2], 4
      %s26 = int_to_ptr.vmem [resolvable:$true] %s25
      %31 = dma.hbm_to_vmem [thread:$0]  %s24, 2048, %s26, [#allocation3], 128, 128, 8
    $region9: #{_forward_impl.1} parent=1 // pred_fallthru
      _
    // Predicated region
    $region10: #{_forward_impl.1} parent=1 // pred_check
      _
    $region11: #{_forward_impl.1} parent=1 // pred_check_branch
      %33 = sbr.rel (0) target = $region13
    $region12: #{_forward_impl.1} parent=1 // pred_region
      _
    $region13: #{_forward_impl.1} parent=1 // pred_fallthru
      _
    // Predicated region
    $region14: #{_forward_impl.1} parent=1 // pred_check
      _
    $region15: #{_forward_impl.1} parent=1 // pred_check_branch
      %35 = sbr.rel (0) target = $region17
    $region16: #{_forward_impl.1} parent=1 // pred_region
      %37 = vsyncadd [#allocation5], 0
      %s38 = sshll.u32 %s3, 4
      %s39 = int_to_ptr.hbm [resolvable:$true] %s38
      %s40 = sshll.u32 [#allocation4], 4
      %s41 = int_to_ptr.vmem [resolvable:$true] %s40
      %46 = dma.hbm_to_vmem [thread:$0]  %s39, 4096, %s41, [#allocation5], 128, 128, 8
    $region17: #{_forward_impl.1} parent=1 // pred_fallthru
      _
    // Predicated region
    $region18: #{_forward_impl.1} parent=1 // pred_check
      _
    $region19: #{_forward_impl.1} parent=1 // pred_check_branch
      %48 = sbr.rel (0) target = $region21
    $region20: #{_forward_impl.1} parent=1 // pred_region
      _
    $region21: #{_forward_impl.1} parent=1 // pred_fallthru
      _
    // Predicated region
    $region22: #{_forward_impl.1} parent=1 // pred_check
      _
    $region23: #{_forward_impl.1} parent=1 // pred_check_branch
      %50 = sbr.rel (0) target = $region25
    $region24: #{_forward_impl.1} parent=1 // pred_region
      %52 = vsyncadd [#allocation5], 0
      %s53 = sshll.u32 %s5, 4
      %s54 = int_to_ptr.hbm [resolvable:$true] %s53
      %s55 = sshll.u32 [#allocation6], 4
      %s56 = int_to_ptr.vmem [resolvable:$true] %s55
      %61 = dma.hbm_to_vmem [thread:$0]  %s54, 4096, %s56, [#allocation5], 128, 128, 8
    $region25: #{_forward_impl.1} parent=1 // pred_fallthru
      _
    // Predicated region
    $region26: #{_forward_impl.1} parent=1 // pred_check
      _
    $region27: #{_forward_impl.1} parent=1 // pred_check_branch
      %63 = sbr.rel (0) target = $region29
    $region28: #{_forward_impl.1} parent=1 // pred_region
      _
    $region29: #{_forward_impl.1} parent=1 // pred_fallthru
      _
    // Predicated region
    $region30: #{_forward_impl.1} parent=1 // pred_check
      _
    $region31: #{_forward_impl.1} parent=1 // pred_check_branch
      %65 = sbr.rel (0) target = $region33
    $region32: #{_forward_impl.1} parent=1 // pred_region
      %67 = vsyncadd [#allocation8], 0
      %s68 = sshll.u32 %s7, 4
      %s69 = int_to_ptr.hbm [resolvable:$true] %s68
      %s70 = sshll.u32 [#allocation7], 4
      %s71 = int_to_ptr.vmem [resolvable:$true] %s70
      %76 = dma.hbm_to_vmem [thread:$0]  %s69, 2048, %s71, [#allocation8], 64, 64, 4
    $region33: #{_forward_impl.1} parent=1 // pred_fallthru
      _
    // Predicated region
    $region34: #{_forward_impl.1} parent=1 // pred_check
      _
    $region35: #{_forward_impl.1} parent=1 // pred_check_branch
      %78 = sbr.rel (0) target = $region37
    $region36: #{_forward_impl.1} parent=1 // pred_region
      _
    $region37: #{_forward_impl.1} parent=1 // pred_fallthru
      _
    // Predicated region
    $region38: #{_forward_impl.1} parent=1 // pred_check
      _
    $region39: #{_forward_impl.1} parent=1 // pred_check_branch
      %80 = sbr.rel (0) target = $region41
    $region40: #{_forward_impl.1} parent=1 // pred_region
      %82 = dma.done [#allocation3], 2048
    $region41: #{_forward_impl.1} parent=1 // pred_fallthru
      _
    // Predicated region
    $region42: #{_forward_impl.1} parent=1 // pred_check
      _
    $region43: #{_forward_impl.1} parent=1 // pred_check_branch
      %84 = sbr.rel (0) target = $region45
    $region44: #{_forward_impl.1} parent=1 // pred_region
      %86 = dma.done [#allocation5], 4096
    $region45: #{_forward_impl.1} parent=1 // pred_fallthru
      _
    // Predicated region
    $region46: #{_forward_impl.1} parent=1 // pred_check
      _
    $region47: #{_forward_impl.1} parent=1 // pred_check_branch
      %88 = sbr.rel (0) target = $region49
    $region48: #{_forward_impl.1} parent=1 // pred_region
      %90 = dma.done [#allocation5], 4096
    $region49: #{_forward_impl.1} parent=1 // pred_fallthru
      _
    // Predicated region
    $region50: #{_forward_impl.1} parent=1 // pred_check
      _
    $region51: #{_forward_impl.1} parent=1 // pred_check_branch
      %92 = sbr.rel (0) target = $region53
    $region52: #{_forward_impl.1} parent=1 // pred_region
      %94 = dma.done [#allocation8], 2048
    $region53: #{_forward_impl.1} parent=1 // pred_fallthru
      _
    %v95 = vld [vmem:[%s2] sm:$0x3]
    %v97 = vperm.slane %v95, 0
    %v98 = vperm.slane %v95, 1
    %v101 = vpack.c.bf16 %v98, %v97
    %v102 = vld [vmem:[%s4] sm:$0x3]
    %v104 = vperm.slane %v102, 0
    %v105 = vperm.slane %v102, 1
    %v108 = vpack.c.bf16 %v105, %v104
    %v109 = vld [vmem:[%s6] sm:$0x3]
    %v111 = vperm.slane %v109, 0
    %v112 = vperm.slane %v109, 1
    %v115 = vpack.c.bf16 %v112, %v111
    %v116 = vld [vmem:[%s8] sm:$0x1]
    %v117 = vld [vmem:[%s0] sm:$0xf]
    %v118 = vld [vmem:[%s0 + $0x4] sm:$0xf]
    %v119 = vld [vmem:[#allocation2] sm:$0xff]
    %v120 = vld [vmem:[#allocation2 + $0x8] sm:$0xff]
    %v121 = vld [vmem:[#allocation2 + $0x10] sm:$0xff]
    %v122 = vld [vmem:[#allocation2 + $0x18] sm:$0xff]
    %v123 = vld [vmem:[#allocation2 + $0x20] sm:$0xff]
    %v124 = vld [vmem:[#allocation2 + $0x28] sm:$0xff]
    %v125 = vld [vmem:[#allocation2 + $0x30] sm:$0xff]
    %v126 = vld [vmem:[#allocation2 + $0x38] sm:$0xff]
    %v127 = vld [vmem:[#allocation2 + $0x40] sm:$0xff]
    %v128 = vld [vmem:[#allocation2 + $0x48] sm:$0xff]
    %v129 = vld [vmem:[#allocation2 + $0x50] sm:$0xff]
    %v130 = vld [vmem:[#allocation2 + $0x58] sm:$0xff]
    %v131 = vld [vmem:[#allocation2 + $0x60] sm:$0xff]
    %v132 = vld [vmem:[#allocation2 + $0x68] sm:$0xff]
    %v133 = vld [vmem:[#allocation2 + $0x70] sm:$0xff]
    %v134 = vld [vmem:[#allocation2 + $0x78] sm:$0xff]
    %v137 = vunpack.c.l.b16 %v117
    %v138 = vunpack.c.l.b16 %v118
    %v139 = vpack.c.b16 %v138, %v137
    %v157 = vunpack.c.l.b16 %v119
    %v158 = vunpack.c.h.b16 %v119
    %v159 = vunpack.c.l.b16 %v120
    %v160 = vunpack.c.h.b16 %v120
    %v161 = vunpack.c.l.b16 %v121
    %v162 = vunpack.c.h.b16 %v121
    %v163 = vunpack.c.l.b16 %v122
    %v164 = vunpack.c.h.b16 %v122
    %v165 = vunpack.c.l.b16 %v123
    %v166 = vunpack.c.h.b16 %v123
    %v167 = vunpack.c.l.b16 %v124
    %v168 = vunpack.c.h.b16 %v124
    %v169 = vunpack.c.l.b16 %v125
    %v170 = vunpack.c.h.b16 %v125
    %v171 = vunpack.c.l.b16 %v126
    %v172 = vunpack.c.h.b16 %v126
    %v173 = vunpack.c.l.b16 %v127
    %v174 = vunpack.c.h.b16 %v127
    %v175 = vunpack.c.l.b16 %v128
    %v176 = vunpack.c.h.b16 %v128
    %v177 = vunpack.c.l.b16 %v129
    %v178 = vunpack.c.h.b16 %v129
    %v179 = vunpack.c.l.b16 %v130
    %v180 = vunpack.c.h.b16 %v130
    %v181 = vunpack.c.l.b16 %v131
    %v182 = vunpack.c.h.b16 %v131
    %v183 = vunpack.c.l.b16 %v132
    %v184 = vunpack.c.h.b16 %v132
    %v185 = vunpack.c.l.b16 %v133
    %v186 = vunpack.c.h.b16 %v133
    %v187 = vunpack.c.l.b16 %v134
    %v188 = vunpack.c.h.b16 %v134
    %v189 = vpack.c.b16 %v159, %v157
    %v190 = vpack.c.b16 %v160, %v158
    %v191 = vpack.c.b16 %v163, %v161
    %v192 = vpack.c.b16 %v164, %v162
    %v193 = vpack.c.b16 %v167, %v165
    %v194 = vpack.c.b16 %v168, %v166
    %v195 = vpack.c.b16 %v171, %v169
    %v196 = vpack.c.b16 %v172, %v170
    %v197 = vpack.c.b16 %v175, %v173
    %v198 = vpack.c.b16 %v176, %v174
    %v199 = vpack.c.b16 %v179, %v177
    %v200 = vpack.c.b16 %v180, %v178
    %v201 = vpack.c.b16 %v183, %v181
    %v202 = vpack.c.b16 %v184, %v182
    %v203 = vpack.c.b16 %v187, %v185
    %v204 = vpack.c.b16 %v188, %v186
    %221 = vmatpush.bf16.msra.mxu0 %v203
    %222 = vmatpush.bf16.msra.mxu0 %v201
    %223 = vmatpush.bf16.msra.mxu0 %v199
    %224 = vmatpush.bf16.msra.mxu0 %v197
    %225 = vmatpush.bf16.msra.mxu0 %v195
    %226 = vmatpush.bf16.msra.mxu0 %v193
    %227 = vmatpush.bf16.msra.mxu0 %v191
    %228 = vmatpush.bf16.msra.mxu0 %v189
    %229 = vmatmul.bf16.gmra.mxu0 %v139
    %v230 = vpop.f32.mrf.mxu0
    %v231 = vadd.f32 0.0, %v230
    %v232 = vpop.f32.mrf.mxu0
    %v233 = vadd.f32 0.0, %v232
    %234 = vdwg.mxu0
    %235 = vmatpush.bf16.msra.mxu0 %v204
    %236 = vmatpush.bf16.msra.mxu0 %v202
    %237 = vmatpush.bf16.msra.mxu0 %v200
    %238 = vmatpush.bf16.msra.mxu0 %v198
    %239 = vmatpush.bf16.msra.mxu0 %v196
    %240 = vmatpush.bf16.msra.mxu0 %v194
    %241 = vmatpush.bf16.msra.mxu0 %v192
    %242 = vmatpush.bf16.msra.mxu0 %v190
    %243 = vmatmul.bf16.gmra.mxu0 %v139
    %v244 = vpop.f32.mrf.mxu0
    %v245 = vadd.f32 0.0, %v244
    %v246 = vpop.f32.mrf.mxu0
    %v247 = vadd.f32 0.0, %v246
    %248 = vdwg.mxu0
    %v249 = vpack.c.bf16 %v245, %v231
    %v250 = vpack.c.bf16 %v247, %v233
    %v252 = vunpack.c.l.b16 %v101
    %v253 = vunpack.c.h.b16 %v101
    %v254 = vpack.c.b16 %v252, %v252
    %v255 = vpack.c.b16 %v253, %v253
    %v257 = vpack.i.b16 %v254, %v254
    %v259 = vperm.slane %v257, 0
    %v261 = vpack.i.b16 %v255, %v255
    %v263 = vperm.slane %v261, 0
    %v264 = vunpack.c.l.bf16 %v249
    %v265 = vunpack.c.h.bf16 %v249
    %v266 = vunpack.c.l.bf16 %v250
    %v267 = vunpack.c.h.bf16 %v250
    %v268 = vunpack.c.l.bf16 %v259
    %v269 = vunpack.c.l.bf16 %v263
    %v270 = vadd.f32 %v264, %v268
    %v271 = vadd.f32 %v265, %v269
    %v272 = vadd.f32 %v266, %v268
    %v273 = vadd.f32 %v267, %v269
    %v274 = vpack.c.bf16 %v271, %v270
    %v275 = vpack.c.bf16 %v273, %v272
    %v276 = vunpack.c.l.bf16 %v274
    %v277 = vunpack.c.h.bf16 %v274
    %v278 = vunpack.c.l.bf16 %v275
    %v279 = vunpack.c.h.bf16 %v275
    %v280 = vmax.f32 %v276, 0.0
    %v281 = vmax.f32 %v277, 0.0
    %v282 = vmax.f32 %v278, 0.0
    %v283 = vmax.f32 %v279, 0.0
    %v284 = vpack.c.bf16 %v282, %v280
    %v285 = vpack.c.bf16 %v283, %v281
    %v286 = vld [vmem:[#allocation4] sm:$0xff]
    %v287 = vld [vmem:[#allocation4 + $0x8] sm:$0xff]
    %v288 = vld [vmem:[#allocation4 + $0x10] sm:$0xff]
    %v289 = vld [vmem:[#allocation4 + $0x18] sm:$0xff]
    %v290 = vld [vmem:[#allocation4 + $0x20] sm:$0xff]
    %v291 = vld [vmem:[#allocation4 + $0x28] sm:$0xff]
    %v292 = vld [vmem:[#allocation4 + $0x30] sm:$0xff]
    %v293 = vld [vmem:[#allocation4 + $0x38] sm:$0xff]
    %v294 = vld [vmem:[#allocation4 + $0x40] sm:$0xff]
    %v295 = vld [vmem:[#allocation4 + $0x48] sm:$0xff]
    %v296 = vld [vmem:[#allocation4 + $0x50] sm:$0xff]
    %v297 = vld [vmem:[#allocation4 + $0x58] sm:$0xff]
    %v298 = vld [vmem:[#allocation4 + $0x60] sm:$0xff]
    %v299 = vld [vmem:[#allocation4 + $0x68] sm:$0xff]
    %v300 = vld [vmem:[#allocation4 + $0x70] sm:$0xff]
    %v301 = vld [vmem:[#allocation4 + $0x78] sm:$0xff]
    %v302 = vld [vmem:[#allocation4 + $0x80] sm:$0xff]
    %v303 = vld [vmem:[#allocation4 + $0x88] sm:$0xff]
    %v304 = vld [vmem:[#allocation4 + $0x90] sm:$0xff]
    %v305 = vld [vmem:[#allocation4 + $0x98] sm:$0xff]
    %v306 = vld [vmem:[#allocation4 + $0xa0] sm:$0xff]
    %v307 = vld [vmem:[#allocation4 + $0xa8] sm:$0xff]
    %v308 = vld [vmem:[#allocation4 + $0xb0] sm:$0xff]
    %v309 = vld [vmem:[#allocation4 + $0xb8] sm:$0xff]
    %v310 = vld [vmem:[#allocation4 + $0xc0] sm:$0xff]
    %v311 = vld [vmem:[#allocation4 + $0xc8] sm:$0xff]
    %v312 = vld [vmem:[#allocation4 + $0xd0] sm:$0xff]
    %v313 = vld [vmem:[#allocation4 + $0xd8] sm:$0xff]
    %v314 = vld [vmem:[#allocation4 + $0xe0] sm:$0xff]
    %v315 = vld [vmem:[#allocation4 + $0xe8] sm:$0xff]
    %v316 = vld [vmem:[#allocation4 + $0xf0] sm:$0xff]
    %v317 = vld [vmem:[#allocation4 + $0xf8] sm:$0xff]
    %v350 = vunpack.c.l.b16 %v286
    %v351 = vunpack.c.h.b16 %v286
    %v352 = vunpack.c.l.b16 %v287
    %v353 = vunpack.c.h.b16 %v287
    %v354 = vunpack.c.l.b16 %v288
    %v355 = vunpack.c.h.b16 %v288
    %v356 = vunpack.c.l.b16 %v289
    %v357 = vunpack.c.h.b16 %v289
    %v358 = vunpack.c.l.b16 %v290
    %v359 = vunpack.c.h.b16 %v290
    %v360 = vunpack.c.l.b16 %v291
    %v361 = vunpack.c.h.b16 %v291
    %v362 = vunpack.c.l.b16 %v292
    %v363 = vunpack.c.h.b16 %v292
    %v364 = vunpack.c.l.b16 %v293
    %v365 = vunpack.c.h.b16 %v293
    %v366 = vunpack.c.l.b16 %v294
    %v367 = vunpack.c.h.b16 %v294
    %v368 = vunpack.c.l.b16 %v295
    %v369 = vunpack.c.h.b16 %v295
    %v370 = vunpack.c.l.b16 %v296
    %v371 = vunpack.c.h.b16 %v296
    %v372 = vunpack.c.l.b16 %v297
    %v373 = vunpack.c.h.b16 %v297
    %v374 = vunpack.c.l.b16 %v298
    %v375 = vunpack.c.h.b16 %v298
    %v376 = vunpack.c.l.b16 %v299
    %v377 = vunpack.c.h.b16 %v299
    %v378 = vunpack.c.l.b16 %v300
    %v379 = vunpack.c.h.b16 %v300
    %v380 = vunpack.c.l.b16 %v301
    %v381 = vunpack.c.h.b16 %v301
    %v382 = vunpack.c.l.b16 %v302
    %v383 = vunpack.c.h.b16 %v302
    %v384 = vunpack.c.l.b16 %v303
    %v385 = vunpack.c.h.b16 %v303
    %v386 = vunpack.c.l.b16 %v304
    %v387 = vunpack.c.h.b16 %v304
    %v388 = vunpack.c.l.b16 %v305
    %v389 = vunpack.c.h.b16 %v305
    %v390 = vunpack.c.l.b16 %v306
    %v391 = vunpack.c.h.b16 %v306
    %v392 = vunpack.c.l.b16 %v307
    %v393 = vunpack.c.h.b16 %v307
    %v394 = vunpack.c.l.b16 %v308
    %v395 = vunpack.c.h.b16 %v308
    %v396 = vunpack.c.l.b16 %v309
    %v397 = vunpack.c.h.b16 %v309
    %v398 = vunpack.c.l.b16 %v310
    %v399 = vunpack.c.h.b16 %v310
    %v400 = vunpack.c.l.b16 %v311
    %v401 = vunpack.c.h.b16 %v311
    %v402 = vunpack.c.l.b16 %v312
    %v403 = vunpack.c.h.b16 %v312
    %v404 = vunpack.c.l.b16 %v313
    %v405 = vunpack.c.h.b16 %v313
    %v406 = vunpack.c.l.b16 %v314
    %v407 = vunpack.c.h.b16 %v314
    %v408 = vunpack.c.l.b16 %v315
    %v409 = vunpack.c.h.b16 %v315
    %v410 = vunpack.c.l.b16 %v316
    %v411 = vunpack.c.h.b16 %v316
    %v412 = vunpack.c.l.b16 %v317
    %v413 = vunpack.c.h.b16 %v317
    %v414 = vpack.c.b16 %v352, %v350
    %v415 = vpack.c.b16 %v353, %v351
    %v416 = vpack.c.b16 %v356, %v354
    %v417 = vpack.c.b16 %v357, %v355
    %v418 = vpack.c.b16 %v360, %v358
    %v419 = vpack.c.b16 %v361, %v359
    %v420 = vpack.c.b16 %v364, %v362
    %v421 = vpack.c.b16 %v365, %v363
    %v422 = vpack.c.b16 %v368, %v366
    %v423 = vpack.c.b16 %v369, %v367
    %v424 = vpack.c.b16 %v372, %v370
    %v425 = vpack.c.b16 %v373, %v371
    %v426 = vpack.c.b16 %v376, %v374
    %v427 = vpack.c.b16 %v377, %v375
    %v428 = vpack.c.b16 %v380, %v378
    %v429 = vpack.c.b16 %v381, %v379
    %v430 = vpack.c.b16 %v384, %v382
    %v431 = vpack.c.b16 %v385, %v383
    %v432 = vpack.c.b16 %v388, %v386
    %v433 = vpack.c.b16 %v389, %v387
    %v434 = vpack.c.b16 %v392, %v390
    %v435 = vpack.c.b16 %v393, %v391
    %v436 = vpack.c.b16 %v396, %v394
    %v437 = vpack.c.b16 %v397, %v395
    %v438 = vpack.c.b16 %v400, %v398
    %v439 = vpack.c.b16 %v401, %v399
    %v440 = vpack.c.b16 %v404, %v402
    %v441 = vpack.c.b16 %v405, %v403
    %v442 = vpack.c.b16 %v408, %v406
    %v443 = vpack.c.b16 %v409, %v407
    %v444 = vpack.c.b16 %v412, %v410
    %v445 = vpack.c.b16 %v413, %v411
    %478 = vmatpush.bf16.msra.mxu0 %v428
    %479 = vmatpush.bf16.msra.mxu0 %v426
    %480 = vmatpush.bf16.msra.mxu0 %v424
    %481 = vmatpush.bf16.msra.mxu0 %v422
    %482 = vmatpush.bf16.msra.mxu0 %v420
    %483 = vmatpush.bf16.msra.mxu0 %v418
    %484 = vmatpush.bf16.msra.mxu0 %v416
    %485 = vmatpush.bf16.msra.mxu0 %v414
    %486 = vmatmul.bf16.gmra.mxu0 %v284
    %v487 = vpop.f32.mrf.mxu0
    %v488 = vadd.f32 0.0, %v487
    %v489 = vpop.f32.mrf.mxu0
    %v490 = vadd.f32 0.0, %v489
    %491 = vdwg.mxu0
    %492 = vmatpush.bf16.msra.mxu0 %v444
    %493 = vmatpush.bf16.msra.mxu0 %v442
    %494 = vmatpush.bf16.msra.mxu0 %v440
    %495 = vmatpush.bf16.msra.mxu0 %v438
    %496 = vmatpush.bf16.msra.mxu0 %v436
    %497 = vmatpush.bf16.msra.mxu0 %v434
    %498 = vmatpush.bf16.msra.mxu0 %v432
    %499 = vmatpush.bf16.msra.mxu0 %v430
    %500 = vmatmul.bf16.gmra.mxu0 %v285
    %v501 = vpop.f32.mrf.mxu0
    %v502 = vadd.f32 %v488, %v501
    %v503 = vpop.f32.mrf.mxu0
    %v504 = vadd.f32 %v490, %v503
    %505 = vdwg.mxu0
    %506 = vmatpush.bf16.msra.mxu0 %v429
    %507 = vmatpush.bf16.msra.mxu0 %v427
    %508 = vmatpush.bf16.msra.mxu0 %v425
    %509 = vmatpush.bf16.msra.mxu0 %v423
    %510 = vmatpush.bf16.msra.mxu0 %v421
    %511 = vmatpush.bf16.msra.mxu0 %v419
    %512 = vmatpush.bf16.msra.mxu0 %v417
    %513 = vmatpush.bf16.msra.mxu0 %v415
    %514 = vmatmul.bf16.gmra.mxu0 %v284
    %v515 = vpop.f32.mrf.mxu0
    %v516 = vadd.f32 0.0, %v515
    %v517 = vpop.f32.mrf.mxu0
    %v518 = vadd.f32 0.0, %v517
    %519 = vdwg.mxu0
    %520 = vmatpush.bf16.msra.mxu0 %v445
    %521 = vmatpush.bf16.msra.mxu0 %v443
    %522 = vmatpush.bf16.msra.mxu0 %v441
    %523 = vmatpush.bf16.msra.mxu0 %v439
    %524 = vmatpush.bf16.msra.mxu0 %v437
    %525 = vmatpush.bf16.msra.mxu0 %v435
    %526 = vmatpush.bf16.msra.mxu0 %v433
    %527 = vmatpush.bf16.msra.mxu0 %v431
    %528 = vmatmul.bf16.gmra.mxu0 %v285
    %v529 = vpop.f32.mrf.mxu0
    %v530 = vadd.f32 %v516, %v529
    %v531 = vpop.f32.mrf.mxu0
    %v532 = vadd.f32 %v518, %v531
    %533 = vdwg.mxu0
    %v534 = vpack.c.bf16 %v530, %v502
    %v535 = vpack.c.bf16 %v532, %v504
    %v537 = vunpack.c.l.b16 %v108
    %v538 = vunpack.c.h.b16 %v108
    %v539 = vpack.c.b16 %v537, %v537
    %v540 = vpack.c.b16 %v538, %v538
    %v542 = vpack.i.b16 %v539, %v539
    %v544 = vperm.slane %v542, 0
    %v546 = vpack.i.b16 %v540, %v540
    %v548 = vperm.slane %v546, 0
    %v549 = vunpack.c.l.bf16 %v534
    %v550 = vunpack.c.h.bf16 %v534
    %v551 = vunpack.c.l.bf16 %v535
    %v552 = vunpack.c.h.bf16 %v535
    %v553 = vunpack.c.l.bf16 %v544
    %v554 = vunpack.c.l.bf16 %v548
    %v555 = vadd.f32 %v549, %v553
    %v556 = vadd.f32 %v550, %v554
    %v557 = vadd.f32 %v551, %v553
    %v558 = vadd.f32 %v552, %v554
    %v559 = vpack.c.bf16 %v556, %v555
    %v560 = vpack.c.bf16 %v558, %v557
    %v561 = vunpack.c.l.bf16 %v559
    %v562 = vunpack.c.h.bf16 %v559
    %v563 = vunpack.c.l.bf16 %v560
    %v564 = vunpack.c.h.bf16 %v560
    %v565 = vmax.f32 %v561, 0.0
    %v566 = vmax.f32 %v562, 0.0
    %v567 = vmax.f32 %v563, 0.0
    %v568 = vmax.f32 %v564, 0.0
    %v569 = vpack.c.bf16 %v567, %v565
    %v570 = vpack.c.bf16 %v568, %v566
    %v571 = vld [vmem:[#allocation6] sm:$0xff]
    %v572 = vld [vmem:[#allocation6 + $0x8] sm:$0xff]
    %v573 = vld [vmem:[#allocation6 + $0x10] sm:$0xff]
    %v574 = vld [vmem:[#allocation6 + $0x18] sm:$0xff]
    %v575 = vld [vmem:[#allocation6 + $0x20] sm:$0xff]
    %v576 = vld [vmem:[#allocation6 + $0x28] sm:$0xff]
    %v577 = vld [vmem:[#allocation6 + $0x30] sm:$0xff]
    %v578 = vld [vmem:[#allocation6 + $0x38] sm:$0xff]
    %v579 = vld [vmem:[#allocation6 + $0x40] sm:$0xff]
    %v580 = vld [vmem:[#allocation6 + $0x48] sm:$0xff]
    %v581 = vld [vmem:[#allocation6 + $0x50] sm:$0xff]
    %v582 = vld [vmem:[#allocation6 + $0x58] sm:$0xff]
    %v583 = vld [vmem:[#allocation6 + $0x60] sm:$0xff]
    %v584 = vld [vmem:[#allocation6 + $0x68] sm:$0xff]
    %v585 = vld [vmem:[#allocation6 + $0x70] sm:$0xff]
    %v586 = vld [vmem:[#allocation6 + $0x78] sm:$0xff]
    %v587 = vld [vmem:[#allocation6 + $0x80] sm:$0xff]
    %v588 = vld [vmem:[#allocation6 + $0x88] sm:$0xff]
    %v589 = vld [vmem:[#allocation6 + $0x90] sm:$0xff]
    %v590 = vld [vmem:[#allocation6 + $0x98] sm:$0xff]
    %v591 = vld [vmem:[#allocation6 + $0xa0] sm:$0xff]
    %v592 = vld [vmem:[#allocation6 + $0xa8] sm:$0xff]
    %v593 = vld [vmem:[#allocation6 + $0xb0] sm:$0xff]
    %v594 = vld [vmem:[#allocation6 + $0xb8] sm:$0xff]
    %v595 = vld [vmem:[#allocation6 + $0xc0] sm:$0xff]
    %v596 = vld [vmem:[#allocation6 + $0xc8] sm:$0xff]
    %v597 = vld [vmem:[#allocation6 + $0xd0] sm:$0xff]
    %v598 = vld [vmem:[#allocation6 + $0xd8] sm:$0xff]
    %v599 = vld [vmem:[#allocation6 + $0xe0] sm:$0xff]
    %v600 = vld [vmem:[#allocation6 + $0xe8] sm:$0xff]
    %v601 = vld [vmem:[#allocation6 + $0xf0] sm:$0xff]
    %v602 = vld [vmem:[#allocation6 + $0xf8] sm:$0xff]
    %v635 = vunpack.c.l.b16 %v571
    %v636 = vunpack.c.h.b16 %v571
    %v637 = vunpack.c.l.b16 %v572
    %v638 = vunpack.c.h.b16 %v572
    %v639 = vunpack.c.l.b16 %v573
    %v640 = vunpack.c.h.b16 %v573
    %v641 = vunpack.c.l.b16 %v574
    %v642 = vunpack.c.h.b16 %v574
    %v643 = vunpack.c.l.b16 %v575
    %v644 = vunpack.c.h.b16 %v575
    %v645 = vunpack.c.l.b16 %v576
    %v646 = vunpack.c.h.b16 %v576
    %v647 = vunpack.c.l.b16 %v577
    %v648 = vunpack.c.h.b16 %v577
    %v649 = vunpack.c.l.b16 %v578
    %v650 = vunpack.c.h.b16 %v578
    %v651 = vunpack.c.l.b16 %v579
    %v652 = vunpack.c.h.b16 %v579
    %v653 = vunpack.c.l.b16 %v580
    %v654 = vunpack.c.h.b16 %v580
    %v655 = vunpack.c.l.b16 %v581
    %v656 = vunpack.c.h.b16 %v581
    %v657 = vunpack.c.l.b16 %v582
    %v658 = vunpack.c.h.b16 %v582
    %v659 = vunpack.c.l.b16 %v583
    %v660 = vunpack.c.h.b16 %v583
    %v661 = vunpack.c.l.b16 %v584
    %v662 = vunpack.c.h.b16 %v584
    %v663 = vunpack.c.l.b16 %v585
    %v664 = vunpack.c.h.b16 %v585
    %v665 = vunpack.c.l.b16 %v586
    %v666 = vunpack.c.h.b16 %v586
    %v667 = vunpack.c.l.b16 %v587
    %v668 = vunpack.c.h.b16 %v587
    %v669 = vunpack.c.l.b16 %v588
    %v670 = vunpack.c.h.b16 %v588
    %v671 = vunpack.c.l.b16 %v589
    %v672 = vunpack.c.h.b16 %v589
    %v673 = vunpack.c.l.b16 %v590
    %v674 = vunpack.c.h.b16 %v590
    %v675 = vunpack.c.l.b16 %v591
    %v676 = vunpack.c.h.b16 %v591
    %v677 = vunpack.c.l.b16 %v592
    %v678 = vunpack.c.h.b16 %v592
    %v679 = vunpack.c.l.b16 %v593
    %v680 = vunpack.c.h.b16 %v593
    %v681 = vunpack.c.l.b16 %v594
    %v682 = vunpack.c.h.b16 %v594
    %v683 = vunpack.c.l.b16 %v595
    %v684 = vunpack.c.h.b16 %v595
    %v685 = vunpack.c.l.b16 %v596
    %v686 = vunpack.c.h.b16 %v596
    %v687 = vunpack.c.l.b16 %v597
    %v688 = vunpack.c.h.b16 %v597
    %v689 = vunpack.c.l.b16 %v598
    %v690 = vunpack.c.h.b16 %v598
    %v691 = vunpack.c.l.b16 %v599
    %v692 = vunpack.c.h.b16 %v599
    %v693 = vunpack.c.l.b16 %v600
    %v694 = vunpack.c.h.b16 %v600
    %v695 = vunpack.c.l.b16 %v601
    %v696 = vunpack.c.h.b16 %v601
    %v697 = vunpack.c.l.b16 %v602
    %v698 = vunpack.c.h.b16 %v602
    %v699 = vpack.c.b16 %v637, %v635
    %v700 = vpack.c.b16 %v638, %v636
    %v701 = vpack.c.b16 %v641, %v639
    %v702 = vpack.c.b16 %v642, %v640
    %v703 = vpack.c.b16 %v645, %v643
    %v704 = vpack.c.b16 %v646, %v644
    %v705 = vpack.c.b16 %v649, %v647
    %v706 = vpack.c.b16 %v650, %v648
    %v707 = vpack.c.b16 %v653, %v651
    %v708 = vpack.c.b16 %v654, %v652
    %v709 = vpack.c.b16 %v657, %v655
    %v710 = vpack.c.b16 %v658, %v656
    %v711 = vpack.c.b16 %v661, %v659
    %v712 = vpack.c.b16 %v662, %v660
    %v713 = vpack.c.b16 %v665, %v663
    %v714 = vpack.c.b16 %v666, %v664
    %v715 = vpack.c.b16 %v669, %v667
    %v716 = vpack.c.b16 %v670, %v668
    %v717 = vpack.c.b16 %v673, %v671
    %v718 = vpack.c.b16 %v674, %v672
    %v719 = vpack.c.b16 %v677, %v675
    %v720 = vpack.c.b16 %v678, %v676
    %v721 = vpack.c.b16 %v681, %v679
    %v722 = vpack.c.b16 %v682, %v680
    %v723 = vpack.c.b16 %v685, %v683
    %v724 = vpack.c.b16 %v686, %v684
    %v725 = vpack.c.b16 %v689, %v687
    %v726 = vpack.c.b16 %v690, %v688
    %v727 = vpack.c.b16 %v693, %v691
    %v728 = vpack.c.b16 %v694, %v692
    %v729 = vpack.c.b16 %v697, %v695
    %v730 = vpack.c.b16 %v698, %v696
    %763 = vmatpush.bf16.msra.mxu0 %v713
    %764 = vmatpush.bf16.msra.mxu0 %v711
    %765 = vmatpush.bf16.msra.mxu0 %v709
    %766 = vmatpush.bf16.msra.mxu0 %v707
    %767 = vmatpush.bf16.msra.mxu0 %v705
    %768 = vmatpush.bf16.msra.mxu0 %v703
    %769 = vmatpush.bf16.msra.mxu0 %v701
    %770 = vmatpush.bf16.msra.mxu0 %v699
    %771 = vmatmul.bf16.gmra.mxu0 %v569
    %v772 = vpop.f32.mrf.mxu0
    %v773 = vadd.f32 0.0, %v772
    %v774 = vpop.f32.mrf.mxu0
    %v775 = vadd.f32 0.0, %v774
    %776 = vdwg.mxu0
    %777 = vmatpush.bf16.msra.mxu0 %v729
    %778 = vmatpush.bf16.msra.mxu0 %v727
    %779 = vmatpush.bf16.msra.mxu0 %v725
    %780 = vmatpush.bf16.msra.mxu0 %v723
    %781 = vmatpush.bf16.msra.mxu0 %v721
    %782 = vmatpush.bf16.msra.mxu0 %v719
    %783 = vmatpush.bf16.msra.mxu0 %v717
    %784 = vmatpush.bf16.msra.mxu0 %v715
    %785 = vmatmul.bf16.gmra.mxu0 %v570
    %v786 = vpop.f32.mrf.mxu0
    %v787 = vadd.f32 %v773, %v786
    %v788 = vpop.f32.mrf.mxu0
    %v789 = vadd.f32 %v775, %v788
    %790 = vdwg.mxu0
    %791 = vmatpush.bf16.msra.mxu0 %v714
    %792 = vmatpush.bf16.msra.mxu0 %v712
    %793 = vmatpush.bf16.msra.mxu0 %v710
    %794 = vmatpush.bf16.msra.mxu0 %v708
    %795 = vmatpush.bf16.msra.mxu0 %v706
    %796 = vmatpush.bf16.msra.mxu0 %v704
    %797 = vmatpush.bf16.msra.mxu0 %v702
    %798 = vmatpush.bf16.msra.mxu0 %v700
    %799 = vmatmul.bf16.gmra.mxu0 %v569
    %v800 = vpop.f32.mrf.mxu0
    %v801 = vadd.f32 0.0, %v800
    %v802 = vpop.f32.mrf.mxu0
    %v803 = vadd.f32 0.0, %v802
    %804 = vdwg.mxu0
    %805 = vmatpush.bf16.msra.mxu0 %v730
    %806 = vmatpush.bf16.msra.mxu0 %v728
    %807 = vmatpush.bf16.msra.mxu0 %v726
    %808 = vmatpush.bf16.msra.mxu0 %v724
    %809 = vmatpush.bf16.msra.mxu0 %v722
    %810 = vmatpush.bf16.msra.mxu0 %v720
    %811 = vmatpush.bf16.msra.mxu0 %v718
    %812 = vmatpush.bf16.msra.mxu0 %v716
    %813 = vmatmul.bf16.gmra.mxu0 %v570
    %v814 = vpop.f32.mrf.mxu0
    %v815 = vadd.f32 %v801, %v814
    %v816 = vpop.f32.mrf.mxu0
    %v817 = vadd.f32 %v803, %v816
    %818 = vdwg.mxu0
    %v819 = vpack.c.bf16 %v815, %v787
    %v820 = vpack.c.bf16 %v817, %v789
    %v822 = vunpack.c.l.b16 %v115
    %v823 = vunpack.c.h.b16 %v115
    %v824 = vpack.c.b16 %v822, %v822
    %v825 = vpack.c.b16 %v823, %v823
    %v827 = vpack.i.b16 %v824, %v824
    %v829 = vperm.slane %v827, 0
    %v831 = vpack.i.b16 %v825, %v825
    %v833 = vperm.slane %v831, 0
    %v834 = vunpack.c.l.bf16 %v819
    %v835 = vunpack.c.h.bf16 %v819
    %v836 = vunpack.c.l.bf16 %v820
    %v837 = vunpack.c.h.bf16 %v820
    %v838 = vunpack.c.l.bf16 %v829
    %v839 = vunpack.c.l.bf16 %v833
    %v840 = vadd.f32 %v834, %v838
    %v841 = vadd.f32 %v835, %v839
    %v842 = vadd.f32 %v836, %v838
    %v843 = vadd.f32 %v837, %v839
    %v844 = vpack.c.bf16 %v841, %v840
    %v845 = vpack.c.bf16 %v843, %v842
    %v846 = vunpack.c.l.bf16 %v844
    %v847 = vunpack.c.h.bf16 %v844
    %v848 = vunpack.c.l.bf16 %v845
    %v849 = vunpack.c.h.bf16 %v845
    %v850 = vmax.f32 %v846, 0.0
    %v851 = vmax.f32 %v847, 0.0
    %v852 = vmax.f32 %v848, 0.0
    %v853 = vmax.f32 %v849, 0.0
    %v854 = vpack.c.bf16 %v852, %v850
    %v855 = vpack.c.bf16 %v853, %v851
    %v856 = vld [vmem:[#allocation7] sm:$0xf]
    %v857 = vld [vmem:[#allocation7 + $0x4] sm:$0xf]
    %v858 = vld [vmem:[#allocation7 + $0x8] sm:$0xf]
    %v859 = vld [vmem:[#allocation7 + $0xc] sm:$0xf]
    %v860 = vld [vmem:[#allocation7 + $0x10] sm:$0xf]
    %v861 = vld [vmem:[#allocation7 + $0x14] sm:$0xf]
    %v862 = vld [vmem:[#allocation7 + $0x18] sm:$0xf]
    %v863 = vld [vmem:[#allocation7 + $0x1c] sm:$0xf]
    %v864 = vld [vmem:[#allocation7 + $0x20] sm:$0xf]
    %v865 = vld [vmem:[#allocation7 + $0x24] sm:$0xf]
    %v866 = vld [vmem:[#allocation7 + $0x28] sm:$0xf]
    %v867 = vld [vmem:[#allocation7 + $0x2c] sm:$0xf]
    %v868 = vld [vmem:[#allocation7 + $0x30] sm:$0xf]
    %v869 = vld [vmem:[#allocation7 + $0x34] sm:$0xf]
    %v870 = vld [vmem:[#allocation7 + $0x38] sm:$0xf]
    %v871 = vld [vmem:[#allocation7 + $0x3c] sm:$0xf]
    %v872 = vld [vmem:[#allocation7 + $0x40] sm:$0xf]
    %v873 = vld [vmem:[#allocation7 + $0x44] sm:$0xf]
    %v874 = vld [vmem:[#allocation7 + $0x48] sm:$0xf]
    %v875 = vld [vmem:[#allocation7 + $0x4c] sm:$0xf]
    %v876 = vld [vmem:[#allocation7 + $0x50] sm:$0xf]
    %v877 = vld [vmem:[#allocation7 + $0x54] sm:$0xf]
    %v878 = vld [vmem:[#allocation7 + $0x58] sm:$0xf]
    %v879 = vld [vmem:[#allocation7 + $0x5c] sm:$0xf]
    %v880 = vld [vmem:[#allocation7 + $0x60] sm:$0xf]
    %v881 = vld [vmem:[#allocation7 + $0x64] sm:$0xf]
    %v882 = vld [vmem:[#allocation7 + $0x68] sm:$0xf]
    %v883 = vld [vmem:[#allocation7 + $0x6c] sm:$0xf]
    %v884 = vld [vmem:[#allocation7 + $0x70] sm:$0xf]
    %v885 = vld [vmem:[#allocation7 + $0x74] sm:$0xf]
    %v886 = vld [vmem:[#allocation7 + $0x78] sm:$0xf]
    %v887 = vld [vmem:[#allocation7 + $0x7c] sm:$0xf]
    %v889 = vperm.slane %v116, 0
    %v923 = vunpack.c.l.b16 %v856
    %v924 = vunpack.c.l.b16 %v857
    %v925 = vunpack.c.l.b16 %v858
    %v926 = vunpack.c.l.b16 %v859
    %v927 = vunpack.c.l.b16 %v860
    %v928 = vunpack.c.l.b16 %v861
    %v929 = vunpack.c.l.b16 %v862
    %v930 = vunpack.c.l.b16 %v863
    %v931 = vunpack.c.l.b16 %v864
    %v932 = vunpack.c.l.b16 %v865
    %v933 = vunpack.c.l.b16 %v866
    %v934 = vunpack.c.l.b16 %v867
    %v935 = vunpack.c.l.b16 %v868
    %v936 = vunpack.c.l.b16 %v869
    %v937 = vunpack.c.l.b16 %v870
    %v938 = vunpack.c.l.b16 %v871
    %v939 = vunpack.c.l.b16 %v872
    %v940 = vunpack.c.l.b16 %v873
    %v941 = vunpack.c.l.b16 %v874
    %v942 = vunpack.c.l.b16 %v875
    %v943 = vunpack.c.l.b16 %v876
    %v944 = vunpack.c.l.b16 %v877
    %v945 = vunpack.c.l.b16 %v878
    %v946 = vunpack.c.l.b16 %v879
    %v947 = vunpack.c.l.b16 %v880
    %v948 = vunpack.c.l.b16 %v881
    %v949 = vunpack.c.l.b16 %v882
    %v950 = vunpack.c.l.b16 %v883
    %v951 = vunpack.c.l.b16 %v884
    %v952 = vunpack.c.l.b16 %v885
    %v953 = vunpack.c.l.b16 %v886
    %v954 = vunpack.c.l.b16 %v887
    %v955 = vpack.c.b16 %v924, %v923
    %v956 = vpack.c.b16 %v926, %v925
    %v957 = vpack.c.b16 %v928, %v927
    %v958 = vpack.c.b16 %v930, %v929
    %v959 = vpack.c.b16 %v932, %v931
    %v960 = vpack.c.b16 %v934, %v933
    %v961 = vpack.c.b16 %v936, %v935
    %v962 = vpack.c.b16 %v938, %v937
    %v963 = vpack.c.b16 %v940, %v939
    %v964 = vpack.c.b16 %v942, %v941
    %v965 = vpack.c.b16 %v944, %v943
    %v966 = vpack.c.b16 %v946, %v945
    %v967 = vpack.c.b16 %v948, %v947
    %v968 = vpack.c.b16 %v950, %v949
    %v969 = vpack.c.b16 %v952, %v951
    %v970 = vpack.c.b16 %v954, %v953
    %987 = vmatpush.bf16.msra.mxu0 %v962
    %988 = vmatpush.bf16.msra.mxu0 %v961
    %989 = vmatpush.bf16.msra.mxu0 %v960
    %990 = vmatpush.bf16.msra.mxu0 %v959
    %991 = vmatpush.bf16.msra.mxu0 %v958
    %992 = vmatpush.bf16.msra.mxu0 %v957
    %993 = vmatpush.bf16.msra.mxu0 %v956
    %994 = vmatpush.bf16.msra.mxu0 %v955
    %995 = vmatmul.bf16.gmra.mxu0 %v854
    %v996 = vpop.f32.mrf.mxu0
    %v997 = vadd.f32 %v889, %v996
    %v998 = vpop.f32.mrf.mxu0
    %v999 = vadd.f32 %v889, %v998
    %1000 = vdwg.mxu0
    %1001 = vmatpush.bf16.msra.mxu0 %v970
    %1002 = vmatpush.bf16.msra.mxu0 %v969
    %1003 = vmatpush.bf16.msra.mxu0 %v968
    %1004 = vmatpush.bf16.msra.mxu0 %v967
    %1005 = vmatpush.bf16.msra.mxu0 %v966
    %1006 = vmatpush.bf16.msra.mxu0 %v965
    %1007 = vmatpush.bf16.msra.mxu0 %v964
    %1008 = vmatpush.bf16.msra.mxu0 %v963
    %1009 = vmatmul.bf16.gmra.mxu0 %v855
    %v1010 = vpop.f32.mrf.mxu0
    %v1011 = vadd.f32 %v997, %v1010
    %v1012 = vpop.f32.mrf.mxu0
    %v1013 = vadd.f32 %v999, %v1012
    %1014 = vdwg.mxu0
    %1015 = vst [vmem:[%s9] sm:$0xff] %v1011
    %1016 = vst [vmem:[%s9 + $0x8] sm:$0xff] %v1013
    // Predicated region
    $region54: #{_forward_impl.1} parent=1 // pred_check
      _
    $region55: #{_forward_impl.1} parent=1 // pred_check_branch
      %1018 = sbr.rel (0) target = $region57
    $region56: #{_forward_impl.1} parent=1 // pred_region
      _
    $region57: #{_forward_impl.1} parent=1 // pred_fallthru
      _
    // Predicated region
    $region58: #{_forward_impl.1} parent=1 // pred_check
      _
    $region59: #{_forward_impl.1} parent=1 // pred_check_branch
      %1020 = sbr.rel (0) target = $region61
    $region60: #{_forward_impl.1} parent=1 // pred_region
      _
    $region61: #{_forward_impl.1} parent=1 // pred_fallthru
      _
    %1021 = vsyncpa [#allocation3], 1
    %1022 = vsyncpa [#allocation5], 1
    %1023 = vsyncpa [#allocation8], 1

</llo_original>
